<compile_context>
chip_gen: v6e
topology: v6e:2x2x1
jax: 0.10.0
libtpu: 0.0.40
codegen_flags: <defaults>
</compile_context>

<pallas_src>
import functools

import jax
import jax.numpy as jnp
from jax.experimental import pallas as pl
from jax.experimental.pallas import tpu as pltpu


def dqn_kernel(x_ref, w1_ref, b1_ref, w2_ref, b2_ref, w3_ref, b3_ref, o_ref):
    """relu(x@W1+b1) -> relu(.@W2+b2) -> .@W3+b3 for one batch tile."""
    # In-kernel cast: f32 activation stream from HBM, bf16 MXU operands.
    x = x_ref[...].astype(jnp.bfloat16)

    # Layer 1: bf16 MXU matmul, f32 accumulate, f32 epilogue (bias + ReLU).
    h1 = jnp.dot(x, w1_ref[...], preferred_element_type=jnp.float32)
    h1 = jnp.maximum(h1 + b1_ref[...], 0.0).astype(jnp.bfloat16)

    # Layer 2.
    h2 = jnp.dot(h1, w2_ref[...], preferred_element_type=jnp.float32)
    h2 = jnp.maximum(h2 + b2_ref[...], 0.0).astype(jnp.bfloat16)

    # Layer 3 (no activation), f32 output; columns are lane-padded to 128.
    o_ref[...] = (
        jnp.dot(h2, w3_ref[...], preferred_element_type=jnp.float32) + b3_ref[...]
    )


def _cdiv(a, b):
    return -(-a // b)


def _round_up(x, m):
    return ((x + m - 1) // m) * m


@functools.partial(jax.jit, static_argnames=("block_batch",))
def dqn_forward(state, w1, b1, w2, b2, w3, b3, *, block_batch=None):
    batch, num_states = state.shape
    l2 = w1.shape[1]
    l3 = w2.shape[1]
    num_actions = w3.shape[1]

    # ---- Hardware-aware sizing (trace-time query; conservative fallback). ----
    try:
        vmem_cap = int(pltpu.get_tpu_info().vmem_capacity_bytes)
    except Exception:
        vmem_cap = 64 * 1024 * 1024  # assume the smallest (v7x-like) VMEM
    if block_batch is None:
        # Bigger tiles on 128 MiB parts (v5e/v6e); <=512 rows on 64 MiB (v7x).
        block_batch = 1024 if vmem_cap >= 96 * 1024 * 1024 else 512

    # ---- Lane-dense output: pad num_actions (W3 / b3 columns) up to 128. ----
    na_pad = max(128, _round_up(num_actions, 128))
    if na_pad != num_actions:
        w3 = jnp.pad(w3, ((0, 0), (0, na_pad - num_actions)))  # zero columns
        b3 = jnp.pad(b3, ((0, 0), (0, na_pad - num_actions)))  # zero bias cols

    # ---- Batch tiling: minimal padding, ragged last tile, >=2 tiles when it
    # ---- lets the "parallel" axis shard across v7x's two TensorCores. -------
    num_tiles = _cdiv(batch, block_batch)
    if num_tiles == 1 and batch >= 32:
        num_tiles = 2
    if num_tiles == 1:
        tb = batch  # single tile; block == full array dim (any size allowed)
    else:
        tb = _round_up(_cdiv(batch, num_tiles), 16)  # bf16 sublane packing

    def vmem_budget(tile_b):
        w_bytes = ((num_states * l2 + l2 * l3 + l3 * na_pad) * 2       # bf16 weights
                   + (l2 + l3 + na_pad) * 4)                           # f32 biases
        stream = tile_b * (num_states + na_pad) * 4                    # f32 x / o tiles
        interm = tile_b * num_states * 2 + tile_b * (l2 + l3) * 6      # bf16 x, f32+bf16 h1/h2
        return 2 * w_bytes + 2 * stream + interm                       # 2x: double buffering

    # Shrink the batch tile until the plan fits ~75% of this generation's VMEM.
    while tb > 16 and vmem_budget(tb) > int(0.75 * vmem_cap):
        tb = max(16, _round_up(tb // 2, 16))
    num_tiles = _cdiv(batch, tb)  # ragged last tile is masked on writeback

    vmem_limit = min(int(0.85 * vmem_cap),
                     max(32 * 1024 * 1024, int(1.5 * vmem_budget(tb))))

    flops = 2 * batch * (num_states * l2 + l2 * l3 + l3 * na_pad)
    bytes_accessed = (
        batch * num_states * 4                                   # x (f32)
        + (num_states * l2 + l2 * l3 + l3 * na_pad) * 2          # weights (bf16)
        + (l2 + l3 + na_pad) * 4                                 # biases (f32)
        + batch * na_pad * 4                                     # output (f32)
    )

    out = pl.pallas_call(
        dqn_kernel,
        out_shape=jax.ShapeDtypeStruct((batch, na_pad), jnp.float32),
        grid=(num_tiles,),
        in_specs=[
            # Activations: one batch tile per grid step (double-buffered).
            pl.BlockSpec((tb, num_states), lambda i: (i, 0)),
            # Weights / biases: constant index_map -> resident across all tiles.
            pl.BlockSpec((num_states, l2), lambda i: (0, 0)),
            pl.BlockSpec((1, l2), lambda i: (0, 0)),
            pl.BlockSpec((l2, l3), lambda i: (0, 0)),
            pl.BlockSpec((1, l3), lambda i: (0, 0)),
            pl.BlockSpec((l3, na_pad), lambda i: (0, 0)),
            pl.BlockSpec((1, na_pad), lambda i: (0, 0)),
        ],
        out_specs=pl.BlockSpec((tb, na_pad), lambda i: (i, 0)),
        compiler_params=pltpu.CompilerParams(
            dimension_semantics=("parallel",),
            vmem_limit_bytes=vmem_limit,
        ),
        cost_estimate=pl.CostEstimate(
            flops=flops, transcendentals=0, bytes_accessed=bytes_accessed
        ),
    )(state, w1, b1, w2, b2, w3, b3)

    if na_pad != num_actions:
        out = out[:, :num_actions]  # drop the zero-padded lane columns
    return out


def init_params(key, num_states, num_actions, layer2_size, layer3_size):
    """Mirror nn.Linear default init U(-1/sqrt(fan_in), +1/sqrt(fan_in)).

    Weights stored transposed as (in, out) in bf16 (MXU operands); biases
    stored as (1, out) in f32 (added on the f32 accumulator).
    """
    # TODO(synk): torch.manual_seed(123) bit-parity of the init is not reproduced;
    # the init distribution (and forward math, up to bf16 operands) is matched.
    def linear(k, fan_in, fan_out):
        kw, kb = jax.random.split(k)
        bound = 1.0 / jnp.sqrt(jnp.float32(fan_in))
        w = jax.random.uniform(kw, (fan_in, fan_out), jnp.float32, -bound, bound)
        b = jax.random.uniform(kb, (1, fan_out), jnp.float32, -bound, bound)
        return w.astype(jnp.bfloat16), b

    k1, k2, k3 = jax.random.split(key, 3)
    w1, b1 = linear(k1, num_states, layer2_size)
    w2, b2 = linear(k2, layer2_size, layer3_size)
    w3, b3 = linear(k3, layer3_size, num_actions)
    return w1, b1, w2, b2, w3, b3


def ref_forward(state, w1, b1, w2, b2, w3, b3):
    """Pure-JAX reference using the same bf16-operand / f32-accumulate recipe."""
    h = jnp.dot(state.astype(jnp.bfloat16), w1, preferred_element_type=jnp.float32) + b1
    h = jnp.maximum(h, 0.0)
    h = jnp.dot(h.astype(jnp.bfloat16), w2, preferred_element_type=jnp.float32) + b2
    h = jnp.maximum(h, 0.0)
    return jnp.dot(h.astype(jnp.bfloat16), w3, preferred_element_type=jnp.float32) + b3


if __name__ == "__main__":
    # Small shapes consistent with the module's forward (defaults 9216/128 are
    # scaled down to keep the example tiny).
    batch = 8
    num_states = 32
    num_actions = 8
    layer2_size = 256
    layer3_size = 128

    key = jax.random.PRNGKey(0)
    k_params, k_state = jax.random.split(key)

    params = init_params(k_params, num_states, num_actions, layer2_size, layer3_size)
    state = jax.random.normal(k_state, (batch, num_states), jnp.float32)

    out = dqn_forward(state, *params)
    out = jax.block_until_ready(out)

    ref = ref_forward(state, *params)

    assert out.shape == (batch, num_actions)
    assert jnp.allclose(out, ref, atol=1e-2, rtol=1e-2), (
        f"max abs err {jnp.max(jnp.abs(out - ref))}"
    )
    print("KERNEL_OK")
</pallas_src>

<mosaic_0001>
module attributes {stable_mosaic.version = 11 : i64} {
  func.func @dqn_kernel(%arg0: i32, %arg1: memref<8x32xf32, #tpu.memory_space<vmem>>, %arg2: memref<32x256xbf16, #tpu.memory_space<vmem>>, %arg3: memref<1x256xf32, #tpu.memory_space<vmem>>, %arg4: memref<256x128xbf16, #tpu.memory_space<vmem>>, %arg5: memref<1x128xf32, #tpu.memory_space<vmem>>, %arg6: memref<128x128xbf16, #tpu.memory_space<vmem>>, %arg7: memref<1x128xf32, #tpu.memory_space<vmem>>, %arg8: memref<8x128xf32, #tpu.memory_space<vmem>>) attributes {dimension_semantics = [#tpu.dimension_semantics<parallel>], iteration_bounds = array<i64: 1>, scalar_prefetch = 0 : i64, scratch_operands = 0 : i64, tpu.core_type = #tpu.core_type<tc>, window_params = [{transform_indices = @transform_0, window_bounds = array<i64: 8, 32>}, {pipeline_mode = #tpu.pipeline_mode<synchronous>, transform_indices = @transform_1, window_bounds = array<i64: 32, 256>}, {pipeline_mode = #tpu.pipeline_mode<synchronous>, transform_indices = @transform_2, window_bounds = array<i64: 1, 256>}, {pipeline_mode = #tpu.pipeline_mode<synchronous>, transform_indices = @transform_3, window_bounds = array<i64: 256, 128>}, {pipeline_mode = #tpu.pipeline_mode<synchronous>, transform_indices = @transform_4, window_bounds = array<i64: 1, 128>}, {pipeline_mode = #tpu.pipeline_mode<synchronous>, transform_indices = @transform_5, window_bounds = array<i64: 128, 128>}, {pipeline_mode = #tpu.pipeline_mode<synchronous>, transform_indices = @transform_6, window_bounds = array<i64: 1, 128>}, {transform_indices = @transform_7, window_bounds = array<i64: 8, 128>}]} {
    %c0 = arith.constant 0 : index
    %c0_0 = arith.constant 0 : index
    %0 = vector.load %arg1[%c0, %c0_0] : memref<8x32xf32, #tpu.memory_space<vmem>>, vector<8x32xf32>
    %1 = arith.truncf %0 : vector<8x32xf32> to vector<8x32xbf16>
    %c0_1 = arith.constant 0 : index
    %c0_2 = arith.constant 0 : index
    %2 = vector.load %arg2[%c0_1, %c0_2] : memref<32x256xbf16, #tpu.memory_space<vmem>>, vector<32x256xbf16>
    %cst = arith.constant dense<0.000000e+00> : vector<8x256xf32>
    %3 = tpu.matmul %1, %2, %cst {dimension_numbers = #tpu.dot_dimension_numbers<[1], [0], [0], [1], [0, 0, 1, 1], [], []>} : vector<8x32xbf16>, vector<32x256xbf16>, vector<8x256xf32> -> vector<8x256xf32>
    %c0_3 = arith.constant 0 : index
    %c0_4 = arith.constant 0 : index
    %4 = vector.load %arg3[%c0_3, %c0_4] : memref<1x256xf32, #tpu.memory_space<vmem>>, vector<1x256xf32>
    %5 = vector.broadcast %4 : vector<1x256xf32> to vector<8x256xf32>
    %6 = arith.addf %3, %5 : vector<8x256xf32>
    %cst_5 = arith.constant 0.000000e+00 : f32
    %7 = vector.broadcast %cst_5 : f32 to vector<8x256xf32>
    %8 = arith.maximumf %6, %7 : vector<8x256xf32>
    %9 = arith.truncf %8 : vector<8x256xf32> to vector<8x256xbf16>
    %c0_6 = arith.constant 0 : index
    %c0_7 = arith.constant 0 : index
    %10 = vector.load %arg4[%c0_6, %c0_7] : memref<256x128xbf16, #tpu.memory_space<vmem>>, vector<256x128xbf16>
    %cst_8 = arith.constant dense<0.000000e+00> : vector<8x128xf32>
    %11 = tpu.matmul %9, %10, %cst_8 {dimension_numbers = #tpu.dot_dimension_numbers<[1], [0], [0], [1], [0, 0, 1, 1], [], []>} : vector<8x256xbf16>, vector<256x128xbf16>, vector<8x128xf32> -> vector<8x128xf32>
    %c0_9 = arith.constant 0 : index
    %c0_10 = arith.constant 0 : index
    %12 = vector.load %arg5[%c0_9, %c0_10] : memref<1x128xf32, #tpu.memory_space<vmem>>, vector<1x128xf32>
    %13 = vector.broadcast %12 : vector<1x128xf32> to vector<8x128xf32>
    %14 = arith.addf %11, %13 : vector<8x128xf32>
    %cst_11 = arith.constant 0.000000e+00 : f32
    %15 = vector.broadcast %cst_11 : f32 to vector<8x128xf32>
    %16 = arith.maximumf %14, %15 : vector<8x128xf32>
    %17 = arith.truncf %16 : vector<8x128xf32> to vector<8x128xbf16>
    %c0_12 = arith.constant 0 : index
    %c0_13 = arith.constant 0 : index
    %18 = vector.load %arg6[%c0_12, %c0_13] : memref<128x128xbf16, #tpu.memory_space<vmem>>, vector<128x128xbf16>
    %cst_14 = arith.constant dense<0.000000e+00> : vector<8x128xf32>
    %19 = tpu.matmul %17, %18, %cst_14 {dimension_numbers = #tpu.dot_dimension_numbers<[1], [0], [0], [1], [0, 0, 1, 1], [], []>} : vector<8x128xbf16>, vector<128x128xbf16>, vector<8x128xf32> -> vector<8x128xf32>
    %c0_15 = arith.constant 0 : index
    %c0_16 = arith.constant 0 : index
    %20 = vector.load %arg7[%c0_15, %c0_16] : memref<1x128xf32, #tpu.memory_space<vmem>>, vector<1x128xf32>
    %21 = vector.broadcast %20 : vector<1x128xf32> to vector<8x128xf32>
    %22 = arith.addf %19, %21 : vector<8x128xf32>
    %c0_17 = arith.constant 0 : index
    %c0_18 = arith.constant 0 : index
    %23 = vector.load %arg8[%c0_17, %c0_18] : memref<8x128xf32, #tpu.memory_space<vmem>>, vector<8x128xf32>
    tpu.vector_store %arg8[%c0_17, %c0_18], %22 {strides = array<i32>} : memref<8x128xf32, #tpu.memory_space<vmem>>, vector<8x128xf32>,
    return
  }
  func.func @transform_0(%arg0: i32) -> (i32, i32) {
    %c0_i32 = arith.constant 0 : i32
    %c0_i32_0 = arith.constant 0 : i32
    return %arg0, %c0_i32 : i32, i32
  }
  func.func @transform_1(%arg0: i32) -> (i32, i32) {
    %c0_i32 = arith.constant 0 : i32
    %c0_i32_0 = arith.constant 0 : i32
    %c0_i32_1 = arith.constant 0 : i32
    return %c0_i32, %c0_i32_0 : i32, i32
  }
  func.func @transform_2(%arg0: i32) -> (i32, i32) {
    %c0_i32 = arith.constant 0 : i32
    %c0_i32_0 = arith.constant 0 : i32
    %c0_i32_1 = arith.constant 0 : i32
    return %c0_i32, %c0_i32_0 : i32, i32
  }
  func.func @transform_3(%arg0: i32) -> (i32, i32) {
    %c0_i32 = arith.constant 0 : i32
    %c0_i32_0 = arith.constant 0 : i32
    %c0_i32_1 = arith.constant 0 : i32
    return %c0_i32, %c0_i32_0 : i32, i32
  }
  func.func @transform_4(%arg0: i32) -> (i32, i32) {
    %c0_i32 = arith.constant 0 : i32
    %c0_i32_0 = arith.constant 0 : i32
    %c0_i32_1 = arith.constant 0 : i32
    return %c0_i32, %c0_i32_0 : i32, i32
  }
  func.func @transform_5(%arg0: i32) -> (i32, i32) {
    %c0_i32 = arith.constant 0 : i32
    %c0_i32_0 = arith.constant 0 : i32
    %c0_i32_1 = arith.constant 0 : i32
    return %c0_i32, %c0_i32_0 : i32, i32
  }
  func.func @transform_6(%arg0: i32) -> (i32, i32) {
    %c0_i32 = arith.constant 0 : i32
    %c0_i32_0 = arith.constant 0 : i32
    %c0_i32_1 = arith.constant 0 : i32
    return %c0_i32, %c0_i32_0 : i32, i32
  }
  func.func @transform_7(%arg0: i32) -> (i32, i32) {
    %c0_i32 = arith.constant 0 : i32
    %c0_i32_0 = arith.constant 0 : i32
    return %arg0, %c0_i32 : i32, i32
  }
}

</mosaic_0001>

<llo_original>
// kernel: dqn_forward.1
$region0: #{dqn_forward.1}
  #allocation0 [shape = 'u32[]', space=smem, size = 0x4, offset = 0x4, fixed_abs, tag = 'smem constant byte address 0x4 - core index']
  #allocation1 [shape = 'u32[144,128]{1,0:T(1,128)}', space=vmem, size = 0x12000, scoped, tag = 'internal scratch']
  %s0 = inlined_call_operand.vmem [shape: f32[8,32], index: 0, kind: input, shape index: {}]
  %s1 = inlined_call_operand.vmem [shape: bf16[32,256], index: 1, kind: input, shape index: {}]
  %s2 = inlined_call_operand.vmem [shape: f32[1,256], index: 2, kind: input, shape index: {}]
  %s3 = inlined_call_operand.vmem [shape: bf16[256,128], index: 3, kind: input, shape index: {}]
  %s4 = inlined_call_operand.vmem [shape: f32[1,128], index: 4, kind: input, shape index: {}]
  %s5 = inlined_call_operand.vmem [shape: bf16[128,128], index: 5, kind: input, shape index: {}]
  %s6 = inlined_call_operand.vmem [shape: f32[1,128], index: 6, kind: input, shape index: {}]
  %s7 = inlined_call_operand.hbm [shape: f32[8,128], index: 7, kind: output, shape index: {}]
  %s8 = sld [smem:[#allocation0]]
  $region38: #{dqn_forward.1} parent=0
    _
  %s10 = ssub.s32 1, %s8
  %s11 = scalar_select 0, %s10, %s8
  $region1: #{dqn_forward.1} parent=0
    #allocation2 [shape = 'u8[4096]{0}', space=vmem, size = 0x1000, scoped, tag = 'output window, operand 0, single buffered']
    #allocation3 [shape = 's32[1]{0}', space=sflag, size = 0x4, scoped, tag = 'scoped memory for dqn_forward.1']
    %12 = vsyncpa [#allocation3], 0
    // Predicated region
    $region2: #{dqn_forward.1} parent=1 // pred_check
      _
    $region3: #{dqn_forward.1} parent=1 // pred_check_branch
      %14 = sbr.rel (0) target = $region5
    $region4: #{dqn_forward.1} parent=1 // pred_region
      _
    $region5: #{dqn_forward.1} parent=1 // pred_fallthru
      _
    // Predicated region
    $region6: #{dqn_forward.1} parent=1 // pred_check
      _
    $region7: #{dqn_forward.1} parent=1 // pred_check_branch
      %16 = sbr.rel (0) target = $region9
    $region8: #{dqn_forward.1} parent=1 // pred_region
      _
    $region9: #{dqn_forward.1} parent=1 // pred_fallthru
      _
    // Predicated region
    $region10: #{dqn_forward.1} parent=1 // pred_check
      _
    $region11: #{dqn_forward.1} parent=1 // pred_check_branch
      %18 = sbr.rel (0) target = $region13
    $region12: #{dqn_forward.1} parent=1 // pred_region
      _
    $region13: #{dqn_forward.1} parent=1 // pred_fallthru
      _
    // Predicated region
    $region14: #{dqn_forward.1} parent=1 // pred_check
      _
    $region15: #{dqn_forward.1} parent=1 // pred_check_branch
      %20 = sbr.rel (0) target = $region17
    $region16: #{dqn_forward.1} parent=1 // pred_region
      _
    $region17: #{dqn_forward.1} parent=1 // pred_fallthru
      _
    // Predicated region
    $region18: #{dqn_forward.1} parent=1 // pred_check
      _
    $region19: #{dqn_forward.1} parent=1 // pred_check_branch
      %22 = sbr.rel (0) target = $region21
    $region20: #{dqn_forward.1} parent=1 // pred_region
      _
    $region21: #{dqn_forward.1} parent=1 // pred_fallthru
      _
    // Predicated region
    $region22: #{dqn_forward.1} parent=1 // pred_check
      _
    $region23: #{dqn_forward.1} parent=1 // pred_check_branch
      %24 = sbr.rel (0) target = $region25
    $region24: #{dqn_forward.1} parent=1 // pred_region
      _
    $region25: #{dqn_forward.1} parent=1 // pred_fallthru
      _
    // Predicated region
    $region26: #{dqn_forward.1} parent=1 // pred_check
      _
    $region27: #{dqn_forward.1} parent=1 // pred_check_branch
      %26 = sbr.rel (0) target = $region29
    $region28: #{dqn_forward.1} parent=1 // pred_region
      _
    $region29: #{dqn_forward.1} parent=1 // pred_fallthru
      _
    %v28 = vld [vmem:[%s0] sm:$0xff]
    %v29 = vpack.c.bf16 %v28, %v28
    %v30 = vld [vmem:[%s1] sm:$0xff]
    %v31 = vld [vmem:[%s1 + $0x8] sm:$0xff]
    %v32 = vld [vmem:[%s1 + $0x10] sm:$0xff]
    %v33 = vld [vmem:[%s1 + $0x18] sm:$0xff]
    %v34 = vld [vmem:[%s2] sm:$0x3]
    %v36 = vlaneseq
    %v37 = vshrl.u32 %v36, 7
    %v38 = vsub.s32 0, %v37
    %v39 = vrot.slane %v34, %v38
    %v40 = vlaneseq
    %v41 = vshrl.u32 %v40, 7
    %v42 = vsub.s32 1, %v41
    %v43 = vrot.slane %v34, %v42
    %v50 = vunpack.c.l.b16 %v30
    %v51 = vunpack.c.h.b16 %v30
    %v52 = vunpack.c.l.b16 %v31
    %v53 = vunpack.c.h.b16 %v31
    %v54 = vunpack.c.l.b16 %v32
    %v55 = vunpack.c.h.b16 %v32
    %v56 = vunpack.c.l.b16 %v33
    %v57 = vunpack.c.h.b16 %v33
    %v58 = vpack.c.b16 %v52, %v50
    %v59 = vpack.c.b16 %v53, %v51
    %v60 = vpack.c.b16 %v56, %v54
    %v61 = vpack.c.b16 %v57, %v55
    %vm66 = vcmask 261120
    %v68 = vsel %vm66, %v29, 0
    %70 = vmatprep.subr.bf16.mxu0 0
    %71 = vmatpush1.bf16.msra.mxu0 0
    %72 = vmatprep.subr.bf16.mxu0 0
    %73 = vmatpush1.bf16.msra.mxu0 0
    %74 = vmatprep.subr.bf16.mxu0 0
    %75 = vmatpush1.bf16.msra.mxu0 0
    %76 = vmatprep.subr.bf16.mxu0 0
    %77 = vmatpush1.bf16.msra.mxu0 0
    %78 = vmatprep.subr.bf16.mxu0 0
    %79 = vmatpush1.bf16.msra.mxu0 0
    %80 = vmatprep.subr.bf16.mxu0 0
    %81 = vmatpush1.bf16.msra.mxu0 0
    %82 = vmatprep.subr.bf16.mxu0 %v61
    %83 = vmatpush1.bf16.msra.mxu0 %v60
    %84 = vmatprep.subr.bf16.mxu0 %v59
    %85 = vmatpush1.bf16.msra.mxu0 %v58
    %86 = vmatprep.subr.bf16.mxu0 0
    %87 = vmatpush2.bf16.msra.mxu0 0
    %88 = vmatprep.subr.bf16.mxu0 0
    %89 = vmatpush2.bf16.msra.mxu0 0
    %90 = vmatprep.subr.bf16.mxu0 0
    %91 = vmatpush2.bf16.msra.mxu0 0
    %92 = vmatprep.subr.bf16.mxu0 0
    %93 = vmatpush2.bf16.msra.mxu0 0
    %94 = vmatprep.subr.bf16.mxu0 0
    %95 = vmatpush2.bf16.msra.mxu0 0
    %96 = vmatprep.subr.bf16.mxu0 0
    %97 = vmatpush2.bf16.msra.mxu0 0
    %98 = vmatprep.subr.bf16.mxu0 0
    %99 = vmatpush2.bf16.msra.mxu0 0
    %100 = vmatprep.subr.bf16.mxu0 0
    %101 = vmatpush2.bf16.msra.mxu0 0
    %102 = vmatprep.mubr.bf16.mxu0 0
    %103 = vmatmul.mubr.bf16.gmra.mxu0 %v68
    %v104 = vpop.f32.mrf.mxu0
    %v105 = vadd.f32 %v39, %v104
    %v106 = vpop.f32.mrf.mxu0
    %v107 = vadd.f32 %v43, %v106
    %v108 = vpop.f32.mrf.mxu0
    %v109 = vpop.f32.mrf.mxu0
    %110 = vdwg.mxu0
    %v111 = vmax.f32 %v105, 0.0
    %v112 = vmax.f32 %v107, 0.0
    %v113 = vpack.c.bf16 %v111, %v111
    %v114 = vpack.c.bf16 %v112, %v112
    %v115 = vld [vmem:[%s3] sm:$0xf]
    %v116 = vld [vmem:[%s3 + $0x4] sm:$0xf]
    %v117 = vld [vmem:[%s3 + $0x8] sm:$0xf]
    %v118 = vld [vmem:[%s3 + $0xc] sm:$0xf]
    %v119 = vld [vmem:[%s3 + $0x10] sm:$0xf]
    %v120 = vld [vmem:[%s3 + $0x14] sm:$0xf]
    %v121 = vld [vmem:[%s3 + $0x18] sm:$0xf]
    %v122 = vld [vmem:[%s3 + $0x1c] sm:$0xf]
    %v123 = vld [vmem:[%s3 + $0x20] sm:$0xf]
    %v124 = vld [vmem:[%s3 + $0x24] sm:$0xf]
    %v125 = vld [vmem:[%s3 + $0x28] sm:$0xf]
    %v126 = vld [vmem:[%s3 + $0x2c] sm:$0xf]
    %v127 = vld [vmem:[%s3 + $0x30] sm:$0xf]
    %v128 = vld [vmem:[%s3 + $0x34] sm:$0xf]
    %v129 = vld [vmem:[%s3 + $0x38] sm:$0xf]
    %v130 = vld [vmem:[%s3 + $0x3c] sm:$0xf]
    %v131 = vld [vmem:[%s3 + $0x40] sm:$0xf]
    %v132 = vld [vmem:[%s3 + $0x44] sm:$0xf]
    %v133 = vld [vmem:[%s3 + $0x48] sm:$0xf]
    %v134 = vld [vmem:[%s3 + $0x4c] sm:$0xf]
    %v135 = vld [vmem:[%s3 + $0x50] sm:$0xf]
    %v136 = vld [vmem:[%s3 + $0x54] sm:$0xf]
    %v137 = vld [vmem:[%s3 + $0x58] sm:$0xf]
    %v138 = vld [vmem:[%s3 + $0x5c] sm:$0xf]
    %v139 = vld [vmem:[%s3 + $0x60] sm:$0xf]
    %v140 = vld [vmem:[%s3 + $0x64] sm:$0xf]
    %v141 = vld [vmem:[%s3 + $0x68] sm:$0xf]
    %v142 = vld [vmem:[%s3 + $0x6c] sm:$0xf]
    %v143 = vld [vmem:[%s3 + $0x70] sm:$0xf]
    %v144 = vld [vmem:[%s3 + $0x74] sm:$0xf]
    %v145 = vld [vmem:[%s3 + $0x78] sm:$0xf]
    %v146 = vld [vmem:[%s3 + $0x7c] sm:$0xf]
    %v147 = vld [vmem:[%s4] sm:$0x1]
    %v149 = vlaneseq
    %v150 = vshrl.u32 %v149, 7
    %v151 = vsub.s32 0, %v150
    %v152 = vrot.slane %v147, %v151
    %v186 = vunpack.c.l.b16 %v115
    %v187 = vunpack.c.l.b16 %v116
    %v188 = vunpack.c.l.b16 %v117
    %v189 = vunpack.c.l.b16 %v118
    %v190 = vunpack.c.l.b16 %v119
    %v191 = vunpack.c.l.b16 %v120
    %v192 = vunpack.c.l.b16 %v121
    %v193 = vunpack.c.l.b16 %v122
    %v194 = vunpack.c.l.b16 %v123
    %v195 = vunpack.c.l.b16 %v124
    %v196 = vunpack.c.l.b16 %v125
    %v197 = vunpack.c.l.b16 %v126
    %v198 = vunpack.c.l.b16 %v127
    %v199 = vunpack.c.l.b16 %v128
    %v200 = vunpack.c.l.b16 %v129
    %v201 = vunpack.c.l.b16 %v130
    %v202 = vunpack.c.l.b16 %v131
    %v203 = vunpack.c.l.b16 %v132
    %v204 = vunpack.c.l.b16 %v133
    %v205 = vunpack.c.l.b16 %v134
    %v206 = vunpack.c.l.b16 %v135
    %v207 = vunpack.c.l.b16 %v136
    %v208 = vunpack.c.l.b16 %v137
    %v209 = vunpack.c.l.b16 %v138
    %v210 = vunpack.c.l.b16 %v139
    %v211 = vunpack.c.l.b16 %v140
    %v212 = vunpack.c.l.b16 %v141
    %v213 = vunpack.c.l.b16 %v142
    %v214 = vunpack.c.l.b16 %v143
    %v215 = vunpack.c.l.b16 %v144
    %v216 = vunpack.c.l.b16 %v145
    %v217 = vunpack.c.l.b16 %v146
    %v218 = vpack.c.b16 %v187, %v186
    %v219 = vpack.c.b16 %v189, %v188
    %v220 = vpack.c.b16 %v191, %v190
    %v221 = vpack.c.b16 %v193, %v192
    %v222 = vpack.c.b16 %v195, %v194
    %v223 = vpack.c.b16 %v197, %v196
    %v224 = vpack.c.b16 %v199, %v198
    %v225 = vpack.c.b16 %v201, %v200
    %v226 = vpack.c.b16 %v203, %v202
    %v227 = vpack.c.b16 %v205, %v204
    %v228 = vpack.c.b16 %v207, %v206
    %v229 = vpack.c.b16 %v209, %v208
    %v230 = vpack.c.b16 %v211, %v210
    %v231 = vpack.c.b16 %v213, %v212
    %v232 = vpack.c.b16 %v215, %v214
    %v233 = vpack.c.b16 %v217, %v216
    %250 = vmatprep.subr.bf16.mxu0 0
    %251 = vmatpush1.bf16.msra.mxu0 %v225
    %252 = vmatprep.subr.bf16.mxu0 0
    %253 = vmatpush1.bf16.msra.mxu0 %v224
    %254 = vmatprep.subr.bf16.mxu0 0
    %255 = vmatpush1.bf16.msra.mxu0 %v223
    %256 = vmatprep.subr.bf16.mxu0 0
    %257 = vmatpush1.bf16.msra.mxu0 %v222
    %258 = vmatprep.subr.bf16.mxu0 0
    %259 = vmatpush1.bf16.msra.mxu0 %v221
    %260 = vmatprep.subr.bf16.mxu0 0
    %261 = vmatpush1.bf16.msra.mxu0 %v220
    %262 = vmatprep.subr.bf16.mxu0 0
    %263 = vmatpush1.bf16.msra.mxu0 %v219
    %264 = vmatprep.subr.bf16.mxu0 0
    %265 = vmatpush1.bf16.msra.mxu0 %v218
    %266 = vmatprep.subr.bf16.mxu0 0
    %267 = vmatpush2.bf16.msra.mxu0 %v233
    %268 = vmatprep.subr.bf16.mxu0 0
    %269 = vmatpush2.bf16.msra.mxu0 %v232
    %270 = vmatprep.subr.bf16.mxu0 0
    %271 = vmatpush2.bf16.msra.mxu0 %v231
    %272 = vmatprep.subr.bf16.mxu0 0
    %273 = vmatpush2.bf16.msra.mxu0 %v230
    %274 = vmatprep.subr.bf16.mxu0 0
    %275 = vmatpush2.bf16.msra.mxu0 %v229
    %276 = vmatprep.subr.bf16.mxu0 0
    %277 = vmatpush2.bf16.msra.mxu0 %v228
    %278 = vmatprep.subr.bf16.mxu0 0
    %279 = vmatpush2.bf16.msra.mxu0 %v227
    %280 = vmatprep.subr.bf16.mxu0 0
    %281 = vmatpush2.bf16.msra.mxu0 %v226
    %282 = vmatprep.mubr.bf16.mxu0 %v114
    %283 = vmatmul.mubr.bf16.gmra.mxu0 %v113
    %v284 = vpop.f32.mrf.mxu0
    %v285 = vadd.f32 %v152, %v284
    %v286 = vpop.f32.mrf.mxu0
    %v287 = vpop.f32.mrf.mxu0
    %v288 = vpop.f32.mrf.mxu0
    %289 = vdwg.mxu0
    %v290 = vmax.f32 %v285, 0.0
    %v291 = vpack.c.bf16 %v290, %v290
    %v292 = vld [vmem:[%s5] sm:$0xf]
    %v293 = vld [vmem:[%s5 + $0x4] sm:$0xf]
    %v294 = vld [vmem:[%s5 + $0x8] sm:$0xf]
    %v295 = vld [vmem:[%s5 + $0xc] sm:$0xf]
    %v296 = vld [vmem:[%s5 + $0x10] sm:$0xf]
    %v297 = vld [vmem:[%s5 + $0x14] sm:$0xf]
    %v298 = vld [vmem:[%s5 + $0x18] sm:$0xf]
    %v299 = vld [vmem:[%s5 + $0x1c] sm:$0xf]
    %v300 = vld [vmem:[%s5 + $0x20] sm:$0xf]
    %v301 = vld [vmem:[%s5 + $0x24] sm:$0xf]
    %v302 = vld [vmem:[%s5 + $0x28] sm:$0xf]
    %v303 = vld [vmem:[%s5 + $0x2c] sm:$0xf]
    %v304 = vld [vmem:[%s5 + $0x30] sm:$0xf]
    %v305 = vld [vmem:[%s5 + $0x34] sm:$0xf]
    %v306 = vld [vmem:[%s5 + $0x38] sm:$0xf]
    %v307 = vld [vmem:[%s5 + $0x3c] sm:$0xf]
    %v308 = vld [vmem:[%s6] sm:$0x1]
    %v310 = vlaneseq
    %v311 = vshrl.u32 %v310, 7
    %v312 = vsub.s32 0, %v311
    %v313 = vrot.slane %v308, %v312
    %v331 = vunpack.c.l.b16 %v292
    %v332 = vunpack.c.l.b16 %v293
    %v333 = vunpack.c.l.b16 %v294
    %v334 = vunpack.c.l.b16 %v295
    %v335 = vunpack.c.l.b16 %v296
    %v336 = vunpack.c.l.b16 %v297
    %v337 = vunpack.c.l.b16 %v298
    %v338 = vunpack.c.l.b16 %v299
    %v339 = vunpack.c.l.b16 %v300
    %v340 = vunpack.c.l.b16 %v301
    %v341 = vunpack.c.l.b16 %v302
    %v342 = vunpack.c.l.b16 %v303
    %v343 = vunpack.c.l.b16 %v304
    %v344 = vunpack.c.l.b16 %v305
    %v345 = vunpack.c.l.b16 %v306
    %v346 = vunpack.c.l.b16 %v307
    %v347 = vpack.c.b16 %v332, %v331
    %v348 = vpack.c.b16 %v334, %v333
    %v349 = vpack.c.b16 %v336, %v335
    %v350 = vpack.c.b16 %v338, %v337
    %v351 = vpack.c.b16 %v340, %v339
    %v352 = vpack.c.b16 %v342, %v341
    %v353 = vpack.c.b16 %v344, %v343
    %v354 = vpack.c.b16 %v346, %v345
    %363 = vmatprep.subr.bf16.mxu0 0
    %364 = vmatpush1.bf16.msra.mxu0 %v354
    %365 = vmatprep.subr.bf16.mxu0 0
    %366 = vmatpush1.bf16.msra.mxu0 %v353
    %367 = vmatprep.subr.bf16.mxu0 0
    %368 = vmatpush1.bf16.msra.mxu0 %v352
    %369 = vmatprep.subr.bf16.mxu0 0
    %370 = vmatpush1.bf16.msra.mxu0 %v351
    %371 = vmatprep.subr.bf16.mxu0 0
    %372 = vmatpush1.bf16.msra.mxu0 %v350
    %373 = vmatprep.subr.bf16.mxu0 0
    %374 = vmatpush1.bf16.msra.mxu0 %v349
    %375 = vmatprep.subr.bf16.mxu0 0
    %376 = vmatpush1.bf16.msra.mxu0 %v348
    %377 = vmatprep.subr.bf16.mxu0 0
    %378 = vmatpush1.bf16.msra.mxu0 %v347
    %379 = vmatprep.subr.bf16.mxu0 0
    %380 = vmatpush2.bf16.msra.mxu0 0
    %381 = vmatprep.subr.bf16.mxu0 0
    %382 = vmatpush2.bf16.msra.mxu0 0
    %383 = vmatprep.subr.bf16.mxu0 0
    %384 = vmatpush2.bf16.msra.mxu0 0
    %385 = vmatprep.subr.bf16.mxu0 0
    %386 = vmatpush2.bf16.msra.mxu0 0
    %387 = vmatprep.subr.bf16.mxu0 0
    %388 = vmatpush2.bf16.msra.mxu0 0
    %389 = vmatprep.subr.bf16.mxu0 0
    %390 = vmatpush2.bf16.msra.mxu0 0
    %391 = vmatprep.subr.bf16.mxu0 0
    %392 = vmatpush2.bf16.msra.mxu0 0
    %393 = vmatprep.subr.bf16.mxu0 0
    %394 = vmatpush2.bf16.msra.mxu0 0
    %395 = vmatprep.mubr.bf16.mxu0 0
    %396 = vmatmul.mubr.bf16.gmra.mxu0 %v291
    %v397 = vpop.f32.mrf.mxu0
    %v398 = vadd.f32 %v313, %v397
    %v399 = vpop.f32.mrf.mxu0
    %v400 = vpop.f32.mrf.mxu0
    %v401 = vpop.f32.mrf.mxu0
    %402 = vdwg.mxu0
    %403 = vst [vmem:[#allocation2] sm:$0xff] %v398
    // Predicated region
    $region30: #{dqn_forward.1} parent=1 // pred_check
      _
    $region31: #{dqn_forward.1} parent=1 // pred_check_branch
      %405 = sbr.rel (0) target = $region33
    $region32: #{dqn_forward.1} parent=1 // pred_region
      %s407 = ssub.s32 128, 128
      %408 = vsyncadd [#allocation3], %s407
      %s410 = sshll.u32 [#allocation2], 4
      %s411 = int_to_ptr.vmem [resolvable:$true] %s410
      %413 = dma.vmem_to_hbm [thread:$0]  %s411, 128, %s7, [#allocation3]
    $region33: #{dqn_forward.1} parent=1 // pred_fallthru
      _
    // Predicated region
    $region34: #{dqn_forward.1} parent=1 // pred_check
      _
    $region35: #{dqn_forward.1} parent=1 // pred_check_branch
      %415 = sbr.rel (0) target = $region37
    $region36: #{dqn_forward.1} parent=1 // pred_region
      %416 = dma.done [#allocation3], 128
    $region37: #{dqn_forward.1} parent=1 // pred_fallthru
      _
    %417 = vsyncpa [#allocation3], 1

</llo_original>
